<compile_context>
chip_gen: v7x
topology: tpu7x:2x2x1
jax: 0.10.0
libtpu: 0.0.40
codegen_flags: <defaults>
</compile_context>

<pallas_src>
import functools

import jax
import jax.numpy as jnp
from jax import lax
from jax.experimental import pallas as pl
from jax.experimental.pallas import tpu as pltpu


def _marginal_triplet_kernel(row_ref, col_ref, o_ref, *, tile, batch_size,
                             margin, needs_mask, precision):
    """row_ref/col_ref: (2, T, Dp) [zjs-half; zis-half] blocks. o_ref: (8, 2T)."""
    i = pl.program_id(0)
    j = pl.program_id(1)
    T = tile
    f32 = jnp.float32

    rows = row_ref[...]                       # (2, T, Dp) rows of this row block
    cols = col_ref[...]                       # (2, T, Dp) cols of this col block
    d = rows.shape[-1]

    lhs = rows.reshape(2 * T, d)              # [zjs rows; zis rows]
    rhs = cols.reshape(2 * T, d)              # [zjs cols; zis cols]

    # One fused MXU call per step: (2T, 2T) block of the full similarity matrix
    # (in "stacked halves" order), A @ B.T without materializing a transpose.
    s = lax.dot_general(lhs, rhs, (((1,), (1,)), ((), ())),
                        preferred_element_type=f32, precision=precision)

    # Positives: pos[p] = <zjs[r], zis[r]>, r = i*T + p; identical for both
    # stacked halves, so compute once per half and tile along the row axis.
    pos_half = jnp.sum(rows[0].astype(f32) * rows[1].astype(f32),
                       axis=-1, keepdims=True)                    # (T, 1)
    off = f32(margin) - jnp.concatenate([pos_half, pos_half], axis=0)  # (2T, 1)

    relu_blk = jnp.maximum(s + off, f32(0.0))                     # (2T, 2T)

    # Exact exclusion of the main diagonal and the +-B (positive) entries of
    # the full similarity matrix: within this block those are exactly the
    # positions where the per-half row index equals the per-half column index.
    # The same mask drops zero-padded batch rows/cols when Bp > B.
    rid_half = lax.broadcasted_iota(jnp.int32, (T, 2 * T), 0) + i * T
    rid = jnp.concatenate([rid_half, rid_half], axis=0)           # (2T, 2T)
    cid_half = lax.broadcasted_iota(jnp.int32, (2 * T, T), 1) + j * T
    cid = jnp.concatenate([cid_half, cid_half], axis=1)           # (2T, 2T)
    keep = rid != cid
    if needs_mask:
        keep = keep & (rid < batch_size) & (cid < batch_size)
    relu_blk = jnp.where(keep, relu_blk, f32(0.0))

    # Reduce the block to an (8, 2T) lane-dense partial with pure sublane-group
    # adds (no cross-lane XLU pass); the final scalar reduce + scale happens in
    # the wrapper.
    partial = jnp.sum(relu_blk.reshape(2 * T // 8, 8, 2 * T), axis=0)

    @pl.when(j == 0)
    def _():
        o_ref[...] = jnp.zeros_like(o_ref)

    o_ref[...] += partial


def _round_up(x, m):
    return (x + m - 1) // m * m


def marginal_triplet_loss(zis, zjs, *, batch_size, margin,
                          use_cosine_similarity,
                          precision=lax.Precision.HIGHEST):
    """Pallas implementation of MarginalTripletLoss.forward(zis, zjs)."""
    assert zis.shape == zjs.shape and zis.shape[0] == batch_size
    b, d = zis.shape
    f32 = jnp.float32

    zis = zis.astype(f32)
    zjs = zjs.astype(f32)
    if use_cosine_similarity:
        # Pre-normalize once in the wrapper (mem-bound O(B*D)); the kernel then
        # only does plain dot products -- no in-kernel normalized-copy scratch.
        # NOTE: per-row norm clamp (1e-8) vs. the reference's norm-product
        # clamp; identical for non-degenerate inputs.
        def _l2_normalize(x):
            n = jnp.sqrt(jnp.sum(x * x, axis=-1, keepdims=True))
            return x / jnp.maximum(n, 1e-8)
        zis = _l2_normalize(zis)
        zjs = _l2_normalize(zjs)

    # Lane-align the hidden dim; sublane/tile-align the per-half batch dim
    # (zero padding is masked out inside the kernel).
    d_pad = _round_up(d, 128)
    tile = 128 if b >= 128 else _round_up(b, 8)
    b_pad = _round_up(b, tile)
    needs_mask = b_pad != b
    pad = ((0, b_pad - b), (0, d_pad - d))
    if pad != ((0, 0), (0, 0)):
        zis = jnp.pad(zis, pad)
        zjs = jnp.pad(zjs, pad)

    # Stack the two halves once: (2, Bp, Dp). The kernel fetches a (2, T, Dp)
    # row block and a (2, T, Dp) column block each step (same array, two
    # views), giving one fused MXU call per step.
    reps = jnp.stack([zjs, zis], axis=0)

    n_blk = b_pad // tile
    row_spec = pl.BlockSpec((2, tile, d_pad), lambda i, j: (0, i, 0))
    col_spec = pl.BlockSpec((2, tile, d_pad), lambda i, j: (0, j, 0))
    out_spec = pl.BlockSpec((8, 2 * tile), lambda i, j: (i, 0))

    # Explicit scoped-VMEM budget: double-buffered input blocks + in-kernel
    # (2T, 2T) temps (sim block, relu acc, index masks) + headroom.
    blk_bytes = 2 * tile * d_pad * 4
    tmp_bytes = 10 * (2 * tile) * (2 * tile) * 4 + 2 * blk_bytes
    vmem_limit = int(1.5 * (2 * 2 * blk_bytes + tmp_bytes)) + (8 << 20)
    vmem_limit = min(max(vmem_limit, 32 << 20), 100 << 20)

    kernel = functools.partial(
        _marginal_triplet_kernel,
        tile=tile,
        batch_size=b,
        margin=float(margin),
        needs_mask=needs_mask,
        precision=precision,
    )

    out = pl.pallas_call(
        kernel,
        out_shape=jax.ShapeDtypeStruct((8 * n_blk, 2 * tile), f32),
        grid=(n_blk, n_blk),
        in_specs=[row_spec, col_spec],
        out_specs=out_spec,
        compiler_params=pltpu.CompilerParams(
            dimension_semantics=("parallel", "arbitrary"),
            vmem_limit_bytes=vmem_limit),
    )(reps, reps)

    return jnp.sum(out) * (1.0 / (4 * batch_size * (batch_size - 1)))


def _reference_loss(zis, zjs, *, batch_size, margin, use_cosine_similarity):
    """Pure-JAX reference mirroring the PyTorch module (for verification)."""
    reps = jnp.concatenate([zjs, zis], axis=0).astype(jnp.float32)
    gram = jnp.matmul(reps, reps.T, precision=lax.Precision.HIGHEST)
    if use_cosine_similarity:
        nrm = jnp.sqrt(jnp.sum(reps * reps, axis=-1, keepdims=True))
        sim = gram / jnp.maximum(nrm * nrm.T, 1e-8)
    else:
        sim = gram
    n = 2 * batch_size
    idx = jnp.arange(n)
    pos = sim[idx, (idx + batch_size) % n][:, None]
    mask = ~(jnp.eye(n, dtype=bool)
             | jnp.eye(n, k=batch_size, dtype=bool)
             | jnp.eye(n, k=-batch_size, dtype=bool))
    logits = sim - pos + margin
    return jnp.sum(jnp.where(mask, jnp.maximum(logits, 0.0), 0.0)) / (
        4 * batch_size * (batch_size - 1))


if __name__ == "__main__":
    margin = 1.0
    key = jax.random.PRNGKey(0)

    # Cases exercise: tiny batch with batch padding/masking, a non-padded
    # single-block batch, both similarity functions, and a multi-block
    # (2x2 grid) case with batch padding and hidden-dim padding.
    cases = [
        (4, 32, True),
        (4, 32, False),
        (24, 96, True),
        (24, 96, False),
        (136, 72, True),
        (136, 72, False),
    ]
    for batch_size, hidden, use_cosine in cases:
        key, k1, k2 = jax.random.split(key, 3)
        zis = jax.random.normal(k1, (batch_size, hidden), dtype=jnp.float32)
        zjs = jax.random.normal(k2, (batch_size, hidden), dtype=jnp.float32)

        loss = marginal_triplet_loss(
            zis, zjs, batch_size=batch_size, margin=margin,
            use_cosine_similarity=use_cosine)
        loss = jax.block_until_ready(loss)

        ref = _reference_loss(
            zis, zjs, batch_size=batch_size, margin=margin,
            use_cosine_similarity=use_cosine)
        assert jnp.allclose(loss, ref, atol=2e-4, rtol=2e-4), (
            batch_size, hidden, use_cosine, loss, ref)

    print("KERNEL_OK")
</pallas_src>

<mosaic_0001>
module attributes {stable_mosaic.version = 11 : i64} {
  func.func @_marginal_triplet_kernel(%arg0: i32, %arg1: i32, %arg2: memref<2x8x128xf32, #tpu.memory_space<vmem>>, %arg3: memref<2x8x128xf32, #tpu.memory_space<vmem>>, %arg4: memref<8x16xf32, #tpu.memory_space<vmem>>) attributes {dimension_semantics = [#tpu.dimension_semantics<parallel>, #tpu.dimension_semantics<arbitrary>], iteration_bounds = array<i64: 1, 1>, scalar_prefetch = 0 : i64, scratch_operands = 0 : i64, tpu.core_type = #tpu.core_type<tc>, window_params = [{transform_indices = @transform_0, window_bounds = array<i64: 2, 8, 128>}, {transform_indices = @transform_1, window_bounds = array<i64: 2, 8, 128>}, {transform_indices = @transform_2, window_bounds = array<i64: 8, 16>}]} {
    %c0 = arith.constant 0 : index
    %c0_0 = arith.constant 0 : index
    %c0_1 = arith.constant 0 : index
    %0 = vector.load %arg2[%c0, %c0_0, %c0_1] : memref<2x8x128xf32, #tpu.memory_space<vmem>>, vector<2x8x128xf32>
    %c0_2 = arith.constant 0 : index
    %c0_3 = arith.constant 0 : index
    %c0_4 = arith.constant 0 : index
    %1 = vector.load %arg3[%c0_2, %c0_3, %c0_4] : memref<2x8x128xf32, #tpu.memory_space<vmem>>, vector<2x8x128xf32>
    %2 = vector.shape_cast %0 : vector<2x8x128xf32> to vector<16x128xf32>
    %3 = vector.shape_cast %1 : vector<2x8x128xf32> to vector<16x128xf32>
    %cst = arith.constant dense<0.000000e+00> : vector<16x16xf32>
    %4 = tpu.matmul %2, %3, %cst {dimension_numbers = #tpu.dot_dimension_numbers<[1], [1], [0], [0], [0, 0, 1, 0], [], []>, precision = #tpu.contract_precision<fp32>} : vector<16x128xf32>, vector<16x128xf32>, vector<16x16xf32> -> vector<16x16xf32>
    %5 = vector.extract_strided_slice %0 {offsets = [0, 0, 0], sizes = [1, 8, 128], strides = [1, 1, 1]} : vector<2x8x128xf32> to vector<1x8x128xf32>
    %6 = vector.shape_cast %5 : vector<1x8x128xf32> to vector<8x128xf32>
    %7 = vector.extract_strided_slice %0 {offsets = [1, 0, 0], sizes = [1, 8, 128], strides = [1, 1, 1]} : vector<2x8x128xf32> to vector<1x8x128xf32>
    %8 = vector.shape_cast %7 : vector<1x8x128xf32> to vector<8x128xf32>
    %9 = arith.mulf %6, %8 : vector<8x128xf32>
    %cst_5 = arith.constant dense<0.000000e+00> : vector<8xf32>
    %10 = vector.multi_reduction <add>, %9, %cst_5 [1] : vector<8x128xf32> to vector<8xf32>
    %11 = vector.shape_cast %10 : vector<8xf32> to vector<8x1xf32>
    %12 = tpu.concatenate %11, %11 in 0 : vector<8x1xf32>, vector<8x1xf32> -> vector<16x1xf32>
    %cst_6 = arith.constant 1.000000e+00 : f32
    %13 = vector.broadcast %cst_6 : f32 to vector<16x1xf32>
    %14 = arith.subf %13, %12 : vector<16x1xf32>
    %15 = vector.broadcast %14 : vector<16x1xf32> to vector<16x16xf32>
    %16 = arith.addf %4, %15 : vector<16x16xf32>
    %cst_7 = arith.constant 0.000000e+00 : f32
    %17 = vector.broadcast %cst_7 : f32 to vector<16x16xf32>
    %18 = arith.maximumf %16, %17 : vector<16x16xf32>
    %19 = tpu.iota {dimensions = array<i32: 0>} : vector<8x16xi32>
    %c8_i32 = arith.constant 8 : i32
    %20 = arith.muli %arg0, %c8_i32 : i32
    %21 = vector.broadcast %20 : i32 to vector<8x16xi32>
    %22 = arith.addi %19, %21 : vector<8x16xi32>
    %23 = tpu.concatenate %22, %22 in 0 : vector<8x16xi32>, vector<8x16xi32> -> vector<16x16xi32>
    %24 = tpu.iota {dimensions = array<i32: 1>} : vector<16x8xi32>
    %c8_i32_8 = arith.constant 8 : i32
    %25 = arith.muli %arg1, %c8_i32_8 : i32
    %26 = vector.broadcast %25 : i32 to vector<16x8xi32>
    %27 = arith.addi %24, %26 : vector<16x8xi32>
    %28 = tpu.concatenate %27, %27 in 1 : vector<16x8xi32>, vector<16x8xi32> -> vector<16x16xi32>
    %29 = arith.cmpi ne, %23, %28 : vector<16x16xi32>
    %c4_i32 = arith.constant 4 : i32
    %30 = vector.broadcast %c4_i32 : i32 to vector<16x16xi32>
    %31 = arith.cmpi slt, %23, %30 : vector<16x16xi32>
    %32 = arith.andi %29, %31 : vector<16x16xi1>
    %c4_i32_9 = arith.constant 4 : i32
    %33 = vector.broadcast %c4_i32_9 : i32 to vector<16x16xi32>
    %34 = arith.cmpi slt, %28, %33 : vector<16x16xi32>
    %35 = arith.andi %32, %34 : vector<16x16xi1>
    %cst_10 = arith.constant 0.000000e+00 : f32
    %36 = vector.broadcast %cst_10 : f32 to vector<16x16xf32>
    %37 = arith.select %35, %18, %36 : vector<16x16xi1>, vector<16x16xf32>
    %38 = vector.shape_cast %37 : vector<16x16xf32> to vector<2x8x16xf32>
    %cst_11 = arith.constant dense<0.000000e+00> : vector<8x16xf32>
    %39 = vector.multi_reduction <add>, %38, %cst_11 [0] : vector<2x8x16xf32> to vector<8x16xf32>
    %c0_i32 = arith.constant 0 : i32
    %40 = arith.cmpi eq, %arg1, %c0_i32 : i32
    %41 = arith.extui %40 : i1 to i32
    %c0_i32_12 = arith.constant 0 : i32
    %42 = arith.cmpi ne, %41, %c0_i32_12 : i32
    scf.if %42 {
      %cst_17 = arith.constant 0.000000e+00 : f32
      %46 = vector.broadcast %cst_17 : f32 to vector<8x16xf32>
      %c0_18 = arith.constant 0 : index
      %c0_19 = arith.constant 0 : index
      %47 = vector.load %arg4[%c0_18, %c0_19] : memref<8x16xf32, #tpu.memory_space<vmem>>, vector<8x16xf32>
      tpu.vector_store %arg4[%c0_18, %c0_19], %46 {strides = array<i32>} : memref<8x16xf32, #tpu.memory_space<vmem>>, vector<8x16xf32>,
    } else {
    }
    %c0_13 = arith.constant 0 : index
    %c0_14 = arith.constant 0 : index
    %43 = vector.load %arg4[%c0_13, %c0_14] : memref<8x16xf32, #tpu.memory_space<vmem>>, vector<8x16xf32>
    %44 = arith.addf %43, %39 : vector<8x16xf32>
    %c0_15 = arith.constant 0 : index
    %c0_16 = arith.constant 0 : index
    %45 = vector.load %arg4[%c0_15, %c0_16] : memref<8x16xf32, #tpu.memory_space<vmem>>, vector<8x16xf32>
    tpu.vector_store %arg4[%c0_15, %c0_16], %44 {strides = array<i32>} : memref<8x16xf32, #tpu.memory_space<vmem>>, vector<8x16xf32>,
    return
  }
  func.func @transform_0(%arg0: i32, %arg1: i32) -> (i32, i32, i32) {
    %c0_i32 = arith.constant 0 : i32
    %c0_i32_0 = arith.constant 0 : i32
    %c0_i32_1 = arith.constant 0 : i32
    return %c0_i32, %arg0, %c0_i32_0 : i32, i32, i32
  }
  func.func @transform_1(%arg0: i32, %arg1: i32) -> (i32, i32, i32) {
    %c0_i32 = arith.constant 0 : i32
    %c0_i32_0 = arith.constant 0 : i32
    %c0_i32_1 = arith.constant 0 : i32
    return %c0_i32, %arg1, %c0_i32_0 : i32, i32, i32
  }
  func.func @transform_2(%arg0: i32, %arg1: i32) -> (i32, i32) {
    %c0_i32 = arith.constant 0 : i32
    %c0_i32_0 = arith.constant 0 : i32
    return %arg0, %c0_i32 : i32, i32
  }
}

</mosaic_0001>

<llo_original>
// kernel: tpu_custom_call.1
$region0: #{tpu_custom_call.1}
  #allocation0 [shape = 'u32[]', space=smem, size = 0x4, offset = 0x4, fixed_abs, tag = 'smem constant byte address 0x4 - core index']
  #allocation1 [shape = 'u32[144,128]{1,0:T(1,128)}', space=vmem, size = 0x12000, scoped, tag = 'internal scratch']
  %s0 = inlined_call_operand.hbm [shape: f32[2,8,128], index: 0, kind: input, shape index: {}]
  %s1 = inlined_call_operand.hbm [shape: f32[2,8,128], index: 1, kind: input, shape index: {}]
  %s2 = inlined_call_operand.hbm [shape: f32[8,16], index: 2, kind: output, shape index: {}]
  %s3 = sld [smem:[#allocation0]]
  $region30: #{tpu_custom_call.1} parent=0
    _
  %s5 = ssub.s32 1, %s3
  %s6 = scalar_select 0, %s5, %s3
  $region1: #{tpu_custom_call.1} parent=0
    #allocation2 [shape = 'u8[8192]{0}', space=vmem, size = 0x2000, scoped, tag = 'input window, operand 0, single buffered']
    #allocation3 [shape = 's32[1]{0}', space=sflag, size = 0x4, scoped, tag = 'scoped memory for tpu_custom_call.1']
    #allocation4 [shape = 's32[1]{0}', space=sflag, size = 0x4, scoped, tag = 'scoped memory for tpu_custom_call.1']
    #allocation5 [shape = 'u8[8192]{0}', space=vmem, size = 0x2000, scoped, tag = 'input window, operand 1, single buffered']
    #allocation6 [shape = 's32[1]{0}', space=sflag, size = 0x4, scoped, tag = 'scoped memory for tpu_custom_call.1']
    #allocation7 [shape = 'u8[4096]{0}', space=vmem, size = 0x1000, scoped, tag = 'output window, operand 0, single buffered']
    %7 = vsyncpa [#allocation3], 0
    %8 = vsyncpa [#allocation6], 0
    %9 = vsyncpa [#allocation4], 0
    // Predicated region
    $region2: #{tpu_custom_call.1} parent=1 // pred_check
      _
    $region3: #{tpu_custom_call.1} parent=1 // pred_check_branch
      %11 = sbr.rel (0) target = $region5
    $region4: #{tpu_custom_call.1} parent=1 // pred_region
      %s13 = ssub.s32 256, 256
      %14 = vsyncadd [#allocation3], %s13
      %s15 = sshll.u32 [#allocation2], 4
      %s16 = int_to_ptr.vmem [resolvable:$true] %s15
      %21 = dma.hbm_to_vmem [thread:$0]  %s0, 256, %s16, [#allocation3], 128, 128, 8
    $region5: #{tpu_custom_call.1} parent=1 // pred_fallthru
      _
    // Predicated region
    $region6: #{tpu_custom_call.1} parent=1 // pred_check
      _
    $region7: #{tpu_custom_call.1} parent=1 // pred_check_branch
      %23 = sbr.rel (0) target = $region9
    $region8: #{tpu_custom_call.1} parent=1 // pred_region
      %s25 = ssub.s32 256, 256
      %26 = vsyncadd [#allocation6], %s25
      %s27 = sshll.u32 [#allocation5], 4
      %s28 = int_to_ptr.vmem [resolvable:$true] %s27
      %33 = dma.hbm_to_vmem [thread:$0]  %s1, 256, %s28, [#allocation6], 128, 128, 8
    $region9: #{tpu_custom_call.1} parent=1 // pred_fallthru
      _
    // Predicated region
    $region10: #{tpu_custom_call.1} parent=1 // pred_check
      _
    $region11: #{tpu_custom_call.1} parent=1 // pred_check_branch
      %35 = sbr.rel (0) target = $region13
    $region12: #{tpu_custom_call.1} parent=1 // pred_region
      %36 = dma.done [#allocation3], 256
    $region13: #{tpu_custom_call.1} parent=1 // pred_fallthru
      _
    // Predicated region
    $region14: #{tpu_custom_call.1} parent=1 // pred_check
      _
    $region15: #{tpu_custom_call.1} parent=1 // pred_check_branch
      %38 = sbr.rel (0) target = $region17
    $region16: #{tpu_custom_call.1} parent=1 // pred_region
      %39 = dma.done [#allocation6], 256
    $region17: #{tpu_custom_call.1} parent=1 // pred_fallthru
      _
    %v40 = vld [vmem:[#allocation2] sm:$0xff]
    %v41 = vld [vmem:[#allocation2 + $0x8] sm:$0xff]
    %v42 = vld [vmem:[#allocation5] sm:$0xff]
    %v43 = vld [vmem:[#allocation5 + $0x8] sm:$0xff]
    %v44 = vmul.f32 %v40, %v41
    %45 = vadd.xlane.f32.xlu0 %v44
    %v46 = vpop.xlane.xlu0 %45
    %v47 = vsub.f32 1.0, %v46
    %49 = vset.pattern.permute.xlu0 0
    %50 = vperm.xlu0 %49, %v47
    %v51 = vpop.permute.xlu0 %50
    %53 = vmatprep.subr.mxu0 0.0
    %v54 = vand.u32 %v42, 4294901760
    %55 = vmatpush1.xpose.msra.mxu0 %v54
    %56 = vmatprep.subr.mxu0 0.0
    %v57 = vand.u32 %v43, 4294901760
    %58 = vmatpush1.xpose.msra.mxu0 %v57
    %59 = vmatprep.subr.mxu0 0.0
    %60 = vmatpush1.xpose.msra.mxu0 0.0
    %61 = vmatprep.subr.mxu0 0.0
    %62 = vmatpush1.xpose.msra.mxu0 0.0
    %63 = vmatprep.subr.mxu0 0.0
    %64 = vmatpush1.xpose.msra.mxu0 0.0
    %65 = vmatprep.subr.mxu0 0.0
    %66 = vmatpush1.xpose.msra.mxu0 0.0
    %67 = vmatprep.subr.mxu0 0.0
    %68 = vmatpush1.xpose.msra.mxu0 0.0
    %69 = vmatprep.subr.mxu0 0.0
    %70 = vmatpush1.xpose.msra.mxu0 0.0
    %71 = vmatprep.subr.mxu0 0.0
    %72 = vmatpush1.xpose.msra.mxu0 0.0
    %73 = vmatprep.subr.mxu0 0.0
    %74 = vmatpush1.xpose.msra.mxu0 0.0
    %75 = vmatprep.subr.mxu0 0.0
    %76 = vmatpush1.xpose.msra.mxu0 0.0
    %77 = vmatprep.subr.mxu0 0.0
    %78 = vmatpush1.xpose.msra.mxu0 0.0
    %79 = vmatprep.subr.mxu0 0.0
    %80 = vmatpush1.xpose.msra.mxu0 0.0
    %81 = vmatprep.subr.mxu0 0.0
    %82 = vmatpush1.xpose.msra.mxu0 0.0
    %83 = vmatprep.subr.mxu0 0.0
    %84 = vmatpush1.xpose.msra.mxu0 0.0
    %85 = vmatprep.subr.mxu0 0.0
    %86 = vmatpush1.xpose.msra.mxu0 0.0
    %87 = vmatprep.subr.mxu0 0.0
    %88 = vmatpush1.xpose.msra.mxu0 0.0
    %89 = vmatprep.subr.mxu0 0.0
    %90 = vmatpush1.xpose.msra.mxu0 0.0
    %91 = vmatprep.subr.mxu0 0.0
    %92 = vmatpush1.xpose.msra.mxu0 0.0
    %93 = vmatprep.subr.mxu0 0.0
    %94 = vmatpush1.xpose.msra.mxu0 0.0
    %95 = vmatprep.subr.mxu0 0.0
    %96 = vmatpush1.xpose.msra.mxu0 0.0
    %97 = vmatprep.subr.mxu0 0.0
    %98 = vmatpush1.xpose.msra.mxu0 0.0
    %99 = vmatprep.subr.mxu0 0.0
    %100 = vmatpush1.xpose.msra.mxu0 0.0
    %101 = vmatprep.subr.mxu0 0.0
    %102 = vmatpush1.xpose.msra.mxu0 0.0
    %103 = vmatprep.subr.mxu0 0.0
    %104 = vmatpush1.xpose.msra.mxu0 0.0
    %105 = vmatprep.subr.mxu0 0.0
    %106 = vmatpush1.xpose.msra.mxu0 0.0
    %107 = vmatprep.subr.mxu0 0.0
    %108 = vmatpush1.xpose.msra.mxu0 0.0
    %109 = vmatprep.subr.mxu0 0.0
    %110 = vmatpush1.xpose.msra.mxu0 0.0
    %111 = vmatprep.subr.mxu0 0.0
    %112 = vmatpush1.xpose.msra.mxu0 0.0
    %113 = vmatprep.subr.mxu0 0.0
    %114 = vmatpush1.xpose.msra.mxu0 0.0
    %115 = vmatprep.subr.mxu0 0.0
    %116 = vmatpush1.xpose.msra.mxu0 0.0
    %117 = vmatprep.subr.mxu0 0.0
    %118 = vmatpush1.xpose.msra.mxu0 0.0
    %119 = vmatprep.mubr.f32.mxu0 0.0
    %v120 = vand.u32 %v40, 4294901760
    %v121 = vsub.f32 %v40, %v120
    %v122 = vand.u32 %v121, 4294901760
    %v123 = vsub.f32 %v121, %v122
    %v124 = vand.u32 %v123, 4294901760
    %125 = vmatmul.mubr.f32.gmra.mrb[0].mxu0 %v124
    %v126 = vpop.f32.mrb[0].mxu0
    %v127 = vadd.f32 %v51, %v126
    %v128 = vpop.f32.mrb[0].mxu0
    %129 = vmatprep.mubr.f32.mxu0 0.0
    %v130 = vand.u32 %v41, 4294901760
    %v131 = vsub.f32 %v41, %v130
    %v132 = vand.u32 %v131, 4294901760
    %v133 = vsub.f32 %v131, %v132
    %v134 = vand.u32 %v133, 4294901760
    %135 = vmatmul.mubr.f32.gmra.mrb[0].mxu0 %v134
    %v136 = vpop.f32.mrb[0].mxu0
    %v137 = vadd.f32 %v51, %v136
    %v138 = vpop.f32.mrb[0].mxu0
    %139 = vdwg.mxu0
    %140 = vmatprep.subr.mxu0 0.0
    %v141 = vand.u32 %v42, 4294901760
    %v142 = vsub.f32 %v42, %v141
    %v143 = vand.u32 %v142, 4294901760
    %v144 = vsub.f32 %v142, %v143
    %v145 = vand.u32 %v144, 4294901760
    %146 = vmatpush1.xpose.msra.mxu0 %v145
    %147 = vmatprep.subr.mxu0 0.0
    %v148 = vand.u32 %v43, 4294901760
    %v149 = vsub.f32 %v43, %v148
    %v150 = vand.u32 %v149, 4294901760
    %v151 = vsub.f32 %v149, %v150
    %v152 = vand.u32 %v151, 4294901760
    %153 = vmatpush1.xpose.msra.mxu0 %v152
    %154 = vmatprep.subr.mxu0 0.0
    %155 = vmatpush1.xpose.msra.mxu0 0.0
    %156 = vmatprep.subr.mxu0 0.0
    %157 = vmatpush1.xpose.msra.mxu0 0.0
    %158 = vmatprep.subr.mxu0 0.0
    %159 = vmatpush1.xpose.msra.mxu0 0.0
    %160 = vmatprep.subr.mxu0 0.0
    %161 = vmatpush1.xpose.msra.mxu0 0.0
    %162 = vmatprep.subr.mxu0 0.0
    %163 = vmatpush1.xpose.msra.mxu0 0.0
    %164 = vmatprep.subr.mxu0 0.0
    %165 = vmatpush1.xpose.msra.mxu0 0.0
    %166 = vmatprep.subr.mxu0 0.0
    %167 = vmatpush1.xpose.msra.mxu0 0.0
    %168 = vmatprep.subr.mxu0 0.0
    %169 = vmatpush1.xpose.msra.mxu0 0.0
    %170 = vmatprep.subr.mxu0 0.0
    %171 = vmatpush1.xpose.msra.mxu0 0.0
    %172 = vmatprep.subr.mxu0 0.0
    %173 = vmatpush1.xpose.msra.mxu0 0.0
    %174 = vmatprep.subr.mxu0 0.0
    %175 = vmatpush1.xpose.msra.mxu0 0.0
    %176 = vmatprep.subr.mxu0 0.0
    %177 = vmatpush1.xpose.msra.mxu0 0.0
    %178 = vmatprep.subr.mxu0 0.0
    %179 = vmatpush1.xpose.msra.mxu0 0.0
    %180 = vmatprep.subr.mxu0 0.0
    %181 = vmatpush1.xpose.msra.mxu0 0.0
    %182 = vmatprep.subr.mxu0 0.0
    %183 = vmatpush1.xpose.msra.mxu0 0.0
    %184 = vmatprep.subr.mxu0 0.0
    %185 = vmatpush1.xpose.msra.mxu0 0.0
    %186 = vmatprep.subr.mxu0 0.0
    %187 = vmatpush1.xpose.msra.mxu0 0.0
    %188 = vmatprep.subr.mxu0 0.0
    %189 = vmatpush1.xpose.msra.mxu0 0.0
    %190 = vmatprep.subr.mxu0 0.0
    %191 = vmatpush1.xpose.msra.mxu0 0.0
    %192 = vmatprep.subr.mxu0 0.0
    %193 = vmatpush1.xpose.msra.mxu0 0.0
    %194 = vmatprep.subr.mxu0 0.0
    %195 = vmatpush1.xpose.msra.mxu0 0.0
    %196 = vmatprep.subr.mxu0 0.0
    %197 = vmatpush1.xpose.msra.mxu0 0.0
    %198 = vmatprep.subr.mxu0 0.0
    %199 = vmatpush1.xpose.msra.mxu0 0.0
    %200 = vmatprep.subr.mxu0 0.0
    %201 = vmatpush1.xpose.msra.mxu0 0.0
    %202 = vmatprep.subr.mxu0 0.0
    %203 = vmatpush1.xpose.msra.mxu0 0.0
    %204 = vmatprep.subr.mxu0 0.0
    %205 = vmatpush1.xpose.msra.mxu0 0.0
    %206 = vmatprep.subr.mxu0 0.0
    %207 = vmatpush1.xpose.msra.mxu0 0.0
    %208 = vmatprep.subr.mxu0 0.0
    %209 = vmatpush1.xpose.msra.mxu0 0.0
    %210 = vmatprep.subr.mxu0 0.0
    %211 = vmatpush1.xpose.msra.mxu0 0.0
    %212 = vmatprep.subr.mxu0 0.0
    %213 = vmatpush1.xpose.msra.mxu0 0.0
    %214 = vmatprep.mubr.f32.mxu0 0.0
    %v215 = vand.u32 %v40, 4294901760
    %216 = vmatmul.mubr.f32.gmra.mrb[0].mxu0 %v215
    %v217 = vpop.f32.mrb[0].mxu0
    %v218 = vadd.f32 %v127, %v217
    %v219 = vpop.f32.mrb[0].mxu0
    %220 = vmatprep.mubr.f32.mxu0 0.0
    %v221 = vand.u32 %v41, 4294901760
    %222 = vmatmul.mubr.f32.gmra.mrb[0].mxu0 %v221
    %v223 = vpop.f32.mrb[0].mxu0
    %v224 = vadd.f32 %v137, %v223
    %v225 = vpop.f32.mrb[0].mxu0
    %226 = vdwg.mxu0
    %227 = vmatprep.subr.mxu0 0.0
    %v228 = vand.u32 %v42, 4294901760
    %v229 = vsub.f32 %v42, %v228
    %230 = vmatpush1.xpose.msra.mxu0 %v229
    %231 = vmatprep.subr.mxu0 0.0
    %v232 = vand.u32 %v43, 4294901760
    %v233 = vsub.f32 %v43, %v232
    %234 = vmatpush1.xpose.msra.mxu0 %v233
    %235 = vmatprep.subr.mxu0 0.0
    %236 = vmatpush1.xpose.msra.mxu0 0.0
    %237 = vmatprep.subr.mxu0 0.0
    %238 = vmatpush1.xpose.msra.mxu0 0.0
    %239 = vmatprep.subr.mxu0 0.0
    %240 = vmatpush1.xpose.msra.mxu0 0.0
    %241 = vmatprep.subr.mxu0 0.0
    %242 = vmatpush1.xpose.msra.mxu0 0.0
    %243 = vmatprep.subr.mxu0 0.0
    %244 = vmatpush1.xpose.msra.mxu0 0.0
    %245 = vmatprep.subr.mxu0 0.0
    %246 = vmatpush1.xpose.msra.mxu0 0.0
    %247 = vmatprep.subr.mxu0 0.0
    %248 = vmatpush1.xpose.msra.mxu0 0.0
    %249 = vmatprep.subr.mxu0 0.0
    %250 = vmatpush1.xpose.msra.mxu0 0.0
    %251 = vmatprep.subr.mxu0 0.0
    %252 = vmatpush1.xpose.msra.mxu0 0.0
    %253 = vmatprep.subr.mxu0 0.0
    %254 = vmatpush1.xpose.msra.mxu0 0.0
    %255 = vmatprep.subr.mxu0 0.0
    %256 = vmatpush1.xpose.msra.mxu0 0.0
    %257 = vmatprep.subr.mxu0 0.0
    %258 = vmatpush1.xpose.msra.mxu0 0.0
    %259 = vmatprep.subr.mxu0 0.0
    %260 = vmatpush1.xpose.msra.mxu0 0.0
    %261 = vmatprep.subr.mxu0 0.0
    %262 = vmatpush1.xpose.msra.mxu0 0.0
    %263 = vmatprep.subr.mxu0 0.0
    %264 = vmatpush1.xpose.msra.mxu0 0.0
    %265 = vmatprep.subr.mxu0 0.0
    %266 = vmatpush1.xpose.msra.mxu0 0.0
    %267 = vmatprep.subr.mxu0 0.0
    %268 = vmatpush1.xpose.msra.mxu0 0.0
    %269 = vmatprep.subr.mxu0 0.0
    %270 = vmatpush1.xpose.msra.mxu0 0.0
    %271 = vmatprep.subr.mxu0 0.0
    %272 = vmatpush1.xpose.msra.mxu0 0.0
    %273 = vmatprep.subr.mxu0 0.0
    %274 = vmatpush1.xpose.msra.mxu0 0.0
    %275 = vmatprep.subr.mxu0 0.0
    %276 = vmatpush1.xpose.msra.mxu0 0.0
    %277 = vmatprep.subr.mxu0 0.0
    %278 = vmatpush1.xpose.msra.mxu0 0.0
    %279 = vmatprep.subr.mxu0 0.0
    %280 = vmatpush1.xpose.msra.mxu0 0.0
    %281 = vmatprep.subr.mxu0 0.0
    %282 = vmatpush1.xpose.msra.mxu0 0.0
    %283 = vmatprep.subr.mxu0 0.0
    %284 = vmatpush1.xpose.msra.mxu0 0.0
    %285 = vmatprep.subr.mxu0 0.0
    %286 = vmatpush1.xpose.msra.mxu0 0.0
    %287 = vmatprep.subr.mxu0 0.0
    %288 = vmatpush1.xpose.msra.mxu0 0.0
    %289 = vmatprep.subr.mxu0 0.0
    %290 = vmatpush1.xpose.msra.mxu0 0.0
    %291 = vmatprep.subr.mxu0 0.0
    %292 = vmatpush1.xpose.msra.mxu0 0.0
    %293 = vmatprep.subr.mxu0 0.0
    %294 = vmatpush1.xpose.msra.mxu0 0.0
    %295 = vmatprep.mubr.f32.mxu0 0.0
    %v296 = vand.u32 %v40, 4294901760
    %v297 = vsub.f32 %v40, %v296
    %298 = vmatmul.mubr.f32.gmra.mrb[0].mxu0 %v297
    %v299 = vpop.f32.mrb[0].mxu0
    %v300 = vadd.f32 %v218, %v299
    %v301 = vpop.f32.mrb[0].mxu0
    %302 = vmatprep.mubr.f32.mxu0 0.0
    %v303 = vand.u32 %v41, 4294901760
    %v304 = vsub.f32 %v41, %v303
    %305 = vmatmul.mubr.f32.gmra.mrb[0].mxu0 %v304
    %v306 = vpop.f32.mrb[0].mxu0
    %v307 = vadd.f32 %v224, %v306
    %v308 = vpop.f32.mrb[0].mxu0
    %309 = vdwg.mxu0
    %310 = vmatprep.subr.mxu0 0.0
    %v311 = vand.u32 %v42, 4294901760
    %312 = vmatpush1.xpose.msra.mxu0 %v311
    %313 = vmatprep.subr.mxu0 0.0
    %v314 = vand.u32 %v43, 4294901760
    %315 = vmatpush1.xpose.msra.mxu0 %v314
    %316 = vmatprep.subr.mxu0 0.0
    %317 = vmatpush1.xpose.msra.mxu0 0.0
    %318 = vmatprep.subr.mxu0 0.0
    %319 = vmatpush1.xpose.msra.mxu0 0.0
    %320 = vmatprep.subr.mxu0 0.0
    %321 = vmatpush1.xpose.msra.mxu0 0.0
    %322 = vmatprep.subr.mxu0 0.0
    %323 = vmatpush1.xpose.msra.mxu0 0.0
    %324 = vmatprep.subr.mxu0 0.0
    %325 = vmatpush1.xpose.msra.mxu0 0.0
    %326 = vmatprep.subr.mxu0 0.0
    %327 = vmatpush1.xpose.msra.mxu0 0.0
    %328 = vmatprep.subr.mxu0 0.0
    %329 = vmatpush1.xpose.msra.mxu0 0.0
    %330 = vmatprep.subr.mxu0 0.0
    %331 = vmatpush1.xpose.msra.mxu0 0.0
    %332 = vmatprep.subr.mxu0 0.0
    %333 = vmatpush1.xpose.msra.mxu0 0.0
    %334 = vmatprep.subr.mxu0 0.0
    %335 = vmatpush1.xpose.msra.mxu0 0.0
    %336 = vmatprep.subr.mxu0 0.0
    %337 = vmatpush1.xpose.msra.mxu0 0.0
    %338 = vmatprep.subr.mxu0 0.0
    %339 = vmatpush1.xpose.msra.mxu0 0.0
    %340 = vmatprep.subr.mxu0 0.0
    %341 = vmatpush1.xpose.msra.mxu0 0.0
    %342 = vmatprep.subr.mxu0 0.0
    %343 = vmatpush1.xpose.msra.mxu0 0.0
    %344 = vmatprep.subr.mxu0 0.0
    %345 = vmatpush1.xpose.msra.mxu0 0.0
    %346 = vmatprep.subr.mxu0 0.0
    %347 = vmatpush1.xpose.msra.mxu0 0.0
    %348 = vmatprep.subr.mxu0 0.0
    %349 = vmatpush1.xpose.msra.mxu0 0.0
    %350 = vmatprep.subr.mxu0 0.0
    %351 = vmatpush1.xpose.msra.mxu0 0.0
    %352 = vmatprep.subr.mxu0 0.0
    %353 = vmatpush1.xpose.msra.mxu0 0.0
    %354 = vmatprep.subr.mxu0 0.0
    %355 = vmatpush1.xpose.msra.mxu0 0.0
    %356 = vmatprep.subr.mxu0 0.0
    %357 = vmatpush1.xpose.msra.mxu0 0.0
    %358 = vmatprep.subr.mxu0 0.0
    %359 = vmatpush1.xpose.msra.mxu0 0.0
    %360 = vmatprep.subr.mxu0 0.0
    %361 = vmatpush1.xpose.msra.mxu0 0.0
    %362 = vmatprep.subr.mxu0 0.0
    %363 = vmatpush1.xpose.msra.mxu0 0.0
    %364 = vmatprep.subr.mxu0 0.0
    %365 = vmatpush1.xpose.msra.mxu0 0.0
    %366 = vmatprep.subr.mxu0 0.0
    %367 = vmatpush1.xpose.msra.mxu0 0.0
    %368 = vmatprep.subr.mxu0 0.0
    %369 = vmatpush1.xpose.msra.mxu0 0.0
    %370 = vmatprep.subr.mxu0 0.0
    %371 = vmatpush1.xpose.msra.mxu0 0.0
    %372 = vmatprep.subr.mxu0 0.0
    %373 = vmatpush1.xpose.msra.mxu0 0.0
    %374 = vmatprep.subr.mxu0 0.0
    %375 = vmatpush1.xpose.msra.mxu0 0.0
    %376 = vmatprep.mubr.f32.mxu0 0.0
    %v377 = vand.u32 %v40, 4294901760
    %v378 = vsub.f32 %v40, %v377
    %v379 = vand.u32 %v378, 4294901760
    %380 = vmatmul.mubr.f32.gmra.mrb[0].mxu0 %v379
    %v381 = vpop.f32.mrb[0].mxu0
    %v382 = vadd.f32 %v300, %v381
    %v383 = vpop.f32.mrb[0].mxu0
    %384 = vmatprep.mubr.f32.mxu0 0.0
    %v385 = vand.u32 %v41, 4294901760
    %v386 = vsub.f32 %v41, %v385
    %v387 = vand.u32 %v386, 4294901760
    %388 = vmatmul.mubr.f32.gmra.mrb[0].mxu0 %v387
    %v389 = vpop.f32.mrb[0].mxu0
    %v390 = vadd.f32 %v307, %v389
    %v391 = vpop.f32.mrb[0].mxu0
    %392 = vdwg.mxu0
    %393 = vmatprep.subr.mxu0 0.0
    %v394 = vand.u32 %v42, 4294901760
    %v395 = vsub.f32 %v42, %v394
    %v396 = vand.u32 %v395, 4294901760
    %397 = vmatpush1.xpose.msra.mxu0 %v396
    %398 = vmatprep.subr.mxu0 0.0
    %v399 = vand.u32 %v43, 4294901760
    %v400 = vsub.f32 %v43, %v399
    %v401 = vand.u32 %v400, 4294901760
    %402 = vmatpush1.xpose.msra.mxu0 %v401
    %403 = vmatprep.subr.mxu0 0.0
    %404 = vmatpush1.xpose.msra.mxu0 0.0
    %405 = vmatprep.subr.mxu0 0.0
    %406 = vmatpush1.xpose.msra.mxu0 0.0
    %407 = vmatprep.subr.mxu0 0.0
    %408 = vmatpush1.xpose.msra.mxu0 0.0
    %409 = vmatprep.subr.mxu0 0.0
    %410 = vmatpush1.xpose.msra.mxu0 0.0
    %411 = vmatprep.subr.mxu0 0.0
    %412 = vmatpush1.xpose.msra.mxu0 0.0
    %413 = vmatprep.subr.mxu0 0.0
    %414 = vmatpush1.xpose.msra.mxu0 0.0
    %415 = vmatprep.subr.mxu0 0.0
    %416 = vmatpush1.xpose.msra.mxu0 0.0
    %417 = vmatprep.subr.mxu0 0.0
    %418 = vmatpush1.xpose.msra.mxu0 0.0
    %419 = vmatprep.subr.mxu0 0.0
    %420 = vmatpush1.xpose.msra.mxu0 0.0
    %421 = vmatprep.subr.mxu0 0.0
    %422 = vmatpush1.xpose.msra.mxu0 0.0
    %423 = vmatprep.subr.mxu0 0.0
    %424 = vmatpush1.xpose.msra.mxu0 0.0
    %425 = vmatprep.subr.mxu0 0.0
    %426 = vmatpush1.xpose.msra.mxu0 0.0
    %427 = vmatprep.subr.mxu0 0.0
    %428 = vmatpush1.xpose.msra.mxu0 0.0
    %429 = vmatprep.subr.mxu0 0.0
    %430 = vmatpush1.xpose.msra.mxu0 0.0
    %431 = vmatprep.subr.mxu0 0.0
    %432 = vmatpush1.xpose.msra.mxu0 0.0
    %433 = vmatprep.subr.mxu0 0.0
    %434 = vmatpush1.xpose.msra.mxu0 0.0
    %435 = vmatprep.subr.mxu0 0.0
    %436 = vmatpush1.xpose.msra.mxu0 0.0
    %437 = vmatprep.subr.mxu0 0.0
    %438 = vmatpush1.xpose.msra.mxu0 0.0
    %439 = vmatprep.subr.mxu0 0.0
    %440 = vmatpush1.xpose.msra.mxu0 0.0
    %441 = vmatprep.subr.mxu0 0.0
    %442 = vmatpush1.xpose.msra.mxu0 0.0
    %443 = vmatprep.subr.mxu0 0.0
    %444 = vmatpush1.xpose.msra.mxu0 0.0
    %445 = vmatprep.subr.mxu0 0.0
    %446 = vmatpush1.xpose.msra.mxu0 0.0
    %447 = vmatprep.subr.mxu0 0.0
    %448 = vmatpush1.xpose.msra.mxu0 0.0
    %449 = vmatprep.subr.mxu0 0.0
    %450 = vmatpush1.xpose.msra.mxu0 0.0
    %451 = vmatprep.subr.mxu0 0.0
    %452 = vmatpush1.xpose.msra.mxu0 0.0
    %453 = vmatprep.subr.mxu0 0.0
    %454 = vmatpush1.xpose.msra.mxu0 0.0
    %455 = vmatprep.subr.mxu0 0.0
    %456 = vmatpush1.xpose.msra.mxu0 0.0
    %457 = vmatprep.subr.mxu0 0.0
    %458 = vmatpush1.xpose.msra.mxu0 0.0
    %459 = vmatprep.subr.mxu0 0.0
    %460 = vmatpush1.xpose.msra.mxu0 0.0
    %461 = vmatprep.subr.mxu0 0.0
    %462 = vmatpush1.xpose.msra.mxu0 0.0
    %463 = vmatprep.mubr.f32.mxu0 0.0
    %v464 = vand.u32 %v40, 4294901760
    %465 = vmatmul.mubr.f32.gmra.mrb[0].mxu0 %v464
    %v466 = vpop.f32.mrb[0].mxu0
    %v467 = vadd.f32 %v382, %v466
    %v468 = vpop.f32.mrb[0].mxu0
    %469 = vmatprep.mubr.f32.mxu0 0.0
    %v470 = vand.u32 %v41, 4294901760
    %471 = vmatmul.mubr.f32.gmra.mrb[0].mxu0 %v470
    %v472 = vpop.f32.mrb[0].mxu0
    %v473 = vadd.f32 %v390, %v472
    %v474 = vpop.f32.mrb[0].mxu0
    %475 = vdwg.mxu0
    %476 = vmatprep.subr.mxu0 0.0
    %v477 = vand.u32 %v42, 4294901760
    %478 = vmatpush1.xpose.msra.mxu0 %v477
    %479 = vmatprep.subr.mxu0 0.0
    %v480 = vand.u32 %v43, 4294901760
    %481 = vmatpush1.xpose.msra.mxu0 %v480
    %482 = vmatprep.subr.mxu0 0.0
    %483 = vmatpush1.xpose.msra.mxu0 0.0
    %484 = vmatprep.subr.mxu0 0.0
    %485 = vmatpush1.xpose.msra.mxu0 0.0
    %486 = vmatprep.subr.mxu0 0.0
    %487 = vmatpush1.xpose.msra.mxu0 0.0
    %488 = vmatprep.subr.mxu0 0.0
    %489 = vmatpush1.xpose.msra.mxu0 0.0
    %490 = vmatprep.subr.mxu0 0.0
    %491 = vmatpush1.xpose.msra.mxu0 0.0
    %492 = vmatprep.subr.mxu0 0.0
    %493 = vmatpush1.xpose.msra.mxu0 0.0
    %494 = vmatprep.subr.mxu0 0.0
    %495 = vmatpush1.xpose.msra.mxu0 0.0
    %496 = vmatprep.subr.mxu0 0.0
    %497 = vmatpush1.xpose.msra.mxu0 0.0
    %498 = vmatprep.subr.mxu0 0.0
    %499 = vmatpush1.xpose.msra.mxu0 0.0
    %500 = vmatprep.subr.mxu0 0.0
    %501 = vmatpush1.xpose.msra.mxu0 0.0
    %502 = vmatprep.subr.mxu0 0.0
    %503 = vmatpush1.xpose.msra.mxu0 0.0
    %504 = vmatprep.subr.mxu0 0.0
    %505 = vmatpush1.xpose.msra.mxu0 0.0
    %506 = vmatprep.subr.mxu0 0.0
    %507 = vmatpush1.xpose.msra.mxu0 0.0
    %508 = vmatprep.subr.mxu0 0.0
    %509 = vmatpush1.xpose.msra.mxu0 0.0
    %510 = vmatprep.subr.mxu0 0.0
    %511 = vmatpush1.xpose.msra.mxu0 0.0
    %512 = vmatprep.subr.mxu0 0.0
    %513 = vmatpush1.xpose.msra.mxu0 0.0
    %514 = vmatprep.subr.mxu0 0.0
    %515 = vmatpush1.xpose.msra.mxu0 0.0
    %516 = vmatprep.subr.mxu0 0.0
    %517 = vmatpush1.xpose.msra.mxu0 0.0
    %518 = vmatprep.subr.mxu0 0.0
    %519 = vmatpush1.xpose.msra.mxu0 0.0
    %520 = vmatprep.subr.mxu0 0.0
    %521 = vmatpush1.xpose.msra.mxu0 0.0
    %522 = vmatprep.subr.mxu0 0.0
    %523 = vmatpush1.xpose.msra.mxu0 0.0
    %524 = vmatprep.subr.mxu0 0.0
    %525 = vmatpush1.xpose.msra.mxu0 0.0
    %526 = vmatprep.subr.mxu0 0.0
    %527 = vmatpush1.xpose.msra.mxu0 0.0
    %528 = vmatprep.subr.mxu0 0.0
    %529 = vmatpush1.xpose.msra.mxu0 0.0
    %530 = vmatprep.subr.mxu0 0.0
    %531 = vmatpush1.xpose.msra.mxu0 0.0
    %532 = vmatprep.subr.mxu0 0.0
    %533 = vmatpush1.xpose.msra.mxu0 0.0
    %534 = vmatprep.subr.mxu0 0.0
    %535 = vmatpush1.xpose.msra.mxu0 0.0
    %536 = vmatprep.subr.mxu0 0.0
    %537 = vmatpush1.xpose.msra.mxu0 0.0
    %538 = vmatprep.subr.mxu0 0.0
    %539 = vmatpush1.xpose.msra.mxu0 0.0
    %540 = vmatprep.subr.mxu0 0.0
    %541 = vmatpush1.xpose.msra.mxu0 0.0
    %542 = vmatprep.mubr.f32.mxu0 0.0
    %v543 = vand.u32 %v40, 4294901760
    %544 = vmatmul.mubr.f32.gmra.mrb[0].mxu0 %v543
    %v545 = vpop.f32.mrb[0].mxu0
    %v546 = vadd.f32 %v467, %v545
    %v547 = vpop.f32.mrb[0].mxu0
    %548 = vmatprep.mubr.f32.mxu0 0.0
    %v549 = vand.u32 %v41, 4294901760
    %550 = vmatmul.mubr.f32.gmra.mrb[0].mxu0 %v549
    %v551 = vpop.f32.mrb[0].mxu0
    %v552 = vadd.f32 %v473, %v551
    %v553 = vpop.f32.mrb[0].mxu0
    %554 = vdwg.mxu0
    %v555 = vmax.f32 %v546, 0.0
    %v556 = vmax.f32 %v552, 0.0
    %v557 = vlaneseq
    %v558 = vshrl.u32 %v557, 7
    %s559 = smul.u32 0, 8
    %v560 = vstv %s559
    %v561 = vadd.s32 %v558, %v560
    %v562 = vlaneseq
    %v563 = vand.u32 %v562, 127
    %s564 = smul.u32 0, 8
    %v565 = vstv %s564
    %v566 = vadd.s32 %v563, %v565
    %567 = vrot.lane.b32.xlu0 %v566, 8
    %v568 = vpop.permute.xlu0 %567
    %vm569 = vcmask 64512
    %v570 = vsel %vm569, %v566, %v568
    %vm571 = vcmp.ne.s32.totalorder %v561, %v570
    %vm572 = vcmp.lt.s32.totalorder %v561, 4
    %vm573 = vmand %vm571, %vm572
    %vm574 = vcmp.lt.s32.totalorder %v570, 4
    %vm575 = vmand %vm573, %vm574
    %v576 = vsel %vm575, %v555, 0.0
    %v577 = vsel %vm575, %v556, 0.0
    %vm578 = vcmask 130048
    %v579 = vsel %vm578, %v576, 0.0
    %v580 = vsel %vm578, %v577, 0.0
    %v581 = vadd.f32 %v579, %v580
    %p582 = scmp.eq.s32.totalorder 0, 0
    // Predicated region
    $region18: #{tpu_custom_call.1} parent=1 // pred_check
      %p583 = pneg %p582
    $region19: #{tpu_custom_call.1} parent=1 // pred_check_branch
      %585 = sbr.rel (%p583) target = $region21
    $region20: #{tpu_custom_call.1} parent=1 // pred_region
      %586 = vst.msk [vmem:[#allocation7] sm:$0xff] %vm578, 0.0
    $region21: #{tpu_custom_call.1} parent=1 // pred_fallthru
      _
    %v587 = vld [vmem:[#allocation7] sm:$0xff]
    %v588 = vadd.f32 %v587, %v581
    %589 = vst.msk [vmem:[#allocation7] sm:$0xff] %vm578, %v588
    // Predicated region
    $region22: #{tpu_custom_call.1} parent=1 // pred_check
      _
    $region23: #{tpu_custom_call.1} parent=1 // pred_check_branch
      %591 = sbr.rel (0) target = $region25
    $region24: #{tpu_custom_call.1} parent=1 // pred_region
      %s593 = ssub.s32 128, 128
      %594 = vsyncadd [#allocation4], %s593
      %s596 = sshll.u32 [#allocation7], 4
      %s597 = int_to_ptr.vmem [resolvable:$true] %s596
      %599 = dma.vmem_to_hbm [thread:$0]  %s597, 128, %s2, [#allocation4]
    $region25: #{tpu_custom_call.1} parent=1 // pred_fallthru
      _
    // Predicated region
    $region26: #{tpu_custom_call.1} parent=1 // pred_check
      _
    $region27: #{tpu_custom_call.1} parent=1 // pred_check_branch
      %601 = sbr.rel (0) target = $region29
    $region28: #{tpu_custom_call.1} parent=1 // pred_region
      %602 = dma.done [#allocation4], 128
    $region29: #{tpu_custom_call.1} parent=1 // pred_fallthru
      _
    %603 = vsyncpa [#allocation3], 1
    %604 = vsyncpa [#allocation6], 1
    %605 = vsyncpa [#allocation4], 1

</llo_original>
